<compile_context>
chip_gen: v5e
topology: v5e:2x2
jax: 0.10.0
libtpu: 0.0.40
codegen_flags: <defaults>
</compile_context>

<pallas_src>
import jax
import jax.numpy as jnp
from jax.experimental import pallas as pl
from jax.experimental.pallas import tpu as pltpu


def _fusion_gated_kernel(t_ref, v_ref, wt_ref, bt_ref, wv_ref, bv_ref, o_ref):
    # t_ref/v_ref/o_ref: (1, C, TILE_HW)   wt_ref/wv_ref: (C, C)   b*_ref: (C, 1)
    t = t_ref[0].astype(jnp.float32)          # (C, TILE_HW)
    v = v_ref[0].astype(jnp.float32)

    # 1x1 conv in NCHW:  y[o, p] = sum_i w[o, i] * x[i, p] + b[o]
    t_lin = jnp.dot(wt_ref[...], t, preferred_element_type=jnp.float32) + bt_ref[...]
    v_lin = jnp.dot(wv_ref[...], v, preferred_element_type=jnp.float32) + bv_ref[...]

    t_gate = jax.nn.sigmoid(t_lin)            # EUP (free slot vs VPU/MXU)
    v_gate = jax.nn.sigmoid(v_lin)

    o_ref[0] = (t_gate * t + v_gate * v).astype(o_ref.dtype)


def _pick_tile_hw(hw, c, itemsize, budget_bytes=12 << 20, cap=8192):
    """Largest spatial tile that (a) keeps 2 inputs + 1 output, double-buffered,
    inside `budget_bytes` of VMEM (safe for v5e's 16 MiB scoped default and
    v7x's 64 MiB physical), (b) is lane-dense (multiple of 128) and (c) divides
    H*W so no padding copy is needed.  Padding is a last resort only."""
    per_col = 6 * c * max(int(itemsize), 4)   # 3 arrays x 2 pipeline buffers, f32 worst case
    max_tile = max(128, budget_bytes // per_col)
    max_tile = min(max_tile, cap)
    if hw <= max_tile:
        return hw, 0                          # full extent in one block, no padding
    t = (max_tile // 128) * 128
    while t >= 128:
        if hw % t == 0:
            return t, 0                       # lane-dense divisor of H*W
        t -= 128
    tile = (max_tile // 128) * 128            # ragged tail: pad (rare)
    return tile, (-hw) % tile


def fusion_gated(t_feat, v_feat, wt, bt, wv, bv):
    """t_feat, v_feat: NCHW arrays.
    wt, wv: PyTorch-style conv weights of shape (C, C, 1, 1).
    bt, bv: biases of shape (C,).
    Returns: NCHW array matching PyTorch Fusion_GATED.forward."""
    N, C, H, W = t_feat.shape
    assert v_feat.shape == (N, C, H, W)
    HW = H * W
    dtype = t_feat.dtype

    tile_hw, pad = _pick_tile_hw(HW, C, jnp.dtype(dtype).itemsize)

    # NCHW -> (N, C, H*W): pure reshape, no transpose, no extra HBM traffic.
    t3 = t_feat.reshape(N, C, HW)
    v3 = v_feat.reshape(N, C, HW)
    if pad:
        # Only taken when H*W has no lane-aligned divisor that fits VMEM.
        t3 = jnp.pad(t3, ((0, 0), (0, 0), (0, pad)))
        v3 = jnp.pad(v3, ((0, 0), (0, 0), (0, pad)))
    hw_p = HW + pad
    grid = (N, hw_p // tile_hw)

    # (C_out, C_in, 1, 1) -> (C_out, C_in): y = W @ x (+ b) in channel-major layout.
    wt_mat = wt[:, :, 0, 0].astype(jnp.float32)
    wv_mat = wv[:, :, 0, 0].astype(jnp.float32)
    bt_col = bt.reshape(C, 1).astype(jnp.float32)
    bv_col = bv.reshape(C, 1).astype(jnp.float32)

    x_spec = pl.BlockSpec((1, C, tile_hw), lambda n, j: (n, 0, j))
    w_spec = pl.BlockSpec((C, C), lambda n, j: (0, 0))
    b_spec = pl.BlockSpec((C, 1), lambda n, j: (0, 0))

    out3 = pl.pallas_call(
        _fusion_gated_kernel,
        out_shape=jax.ShapeDtypeStruct((N, C, hw_p), dtype),
        grid_spec=pltpu.PrefetchScalarGridSpec(
            num_scalar_prefetch=0,
            grid=grid,
            in_specs=[x_spec, x_spec, w_spec, b_spec, w_spec, b_spec],
            out_specs=x_spec,
        ),
        compiler_params=pltpu.CompilerParams(
            dimension_semantics=("parallel", "parallel"),
            vmem_limit_bytes=32 * 1024 * 1024,
        ),
    )(t3, v3, wt_mat, bt_col, wv_mat, bv_col)

    if pad:
        out3 = out3[:, :, :HW]
    return out3.reshape(N, C, H, W)


def _reference(t_feat, v_feat, wt, bt, wv, bv):
    # pure-JAX reference of the PyTorch forward (NCHW, 1x1 conv = einsum)
    def conv1x1(x, w, b):
        y = jnp.einsum('oi,nihw->nohw', w[:, :, 0, 0], x)
        return y + b[None, :, None, None]
    t_gate = jax.nn.sigmoid(conv1x1(t_feat, wt, bt))
    v_gate = jax.nn.sigmoid(conv1x1(v_feat, wv, bv))
    return t_gate * t_feat + v_gate * v_feat


if __name__ == "__main__":
    key = jax.random.PRNGKey(0)
    k1, k2, k3, k4, k5, k6 = jax.random.split(key, 6)

    N, C, H, W = 2, 4, 16, 16
    t_feat = jax.random.normal(k1, (N, C, H, W), dtype=jnp.float32)
    v_feat = jax.random.normal(k2, (N, C, H, W), dtype=jnp.float32)

    # deterministic synthetic parameters (shapes from nn.Conv2d(C, C, 1))
    wt = jax.random.normal(k3, (C, C, 1, 1), dtype=jnp.float32) * 0.1
    bt = jax.random.normal(k4, (C,), dtype=jnp.float32) * 0.1
    wv = jax.random.normal(k5, (C, C, 1, 1), dtype=jnp.float32) * 0.1
    bv = jax.random.normal(k6, (C,), dtype=jnp.float32) * 0.1

    out = fusion_gated(t_feat, v_feat, wt, bt, wv, bv)
    out = jax.block_until_ready(out)

    ref = _reference(t_feat, v_feat, wt, bt, wv, bv)
    assert out.shape == (N, C, H, W)
    assert jnp.allclose(out, ref, atol=1e-5, rtol=1e-5), "mismatch vs reference"

    print("KERNEL_OK")
</pallas_src>

<mosaic_0001>
module attributes {stable_mosaic.version = 11 : i64} {
  func.func @_fusion_gated_kernel(%arg0: i32, %arg1: i32, %arg2: memref<1x4x256xf32, #tpu.memory_space<vmem>>, %arg3: memref<1x4x256xf32, #tpu.memory_space<vmem>>, %arg4: memref<4x4xf32, #tpu.memory_space<vmem>>, %arg5: memref<4x1xf32, #tpu.memory_space<vmem>>, %arg6: memref<4x4xf32, #tpu.memory_space<vmem>>, %arg7: memref<4x1xf32, #tpu.memory_space<vmem>>, %arg8: memref<1x4x256xf32, #tpu.memory_space<vmem>>) attributes {dimension_semantics = [#tpu.dimension_semantics<parallel>, #tpu.dimension_semantics<parallel>], iteration_bounds = array<i64: 2, 1>, scalar_prefetch = 0 : i64, scratch_operands = 0 : i64, tpu.core_type = #tpu.core_type<tc>, window_params = [{transform_indices = @transform_0, window_bounds = array<i64: 1, 4, 256>}, {transform_indices = @transform_1, window_bounds = array<i64: 1, 4, 256>}, {pipeline_mode = #tpu.pipeline_mode<synchronous>, transform_indices = @transform_2, window_bounds = array<i64: 4, 4>}, {pipeline_mode = #tpu.pipeline_mode<synchronous>, transform_indices = @transform_3, window_bounds = array<i64: 4, 1>}, {pipeline_mode = #tpu.pipeline_mode<synchronous>, transform_indices = @transform_4, window_bounds = array<i64: 4, 4>}, {pipeline_mode = #tpu.pipeline_mode<synchronous>, transform_indices = @transform_5, window_bounds = array<i64: 4, 1>}, {transform_indices = @transform_6, window_bounds = array<i64: 1, 4, 256>}]} {
    %c0 = arith.constant 0 : index
    %c0_0 = arith.constant 0 : index
    %c0_1 = arith.constant 0 : index
    %0 = vector.load %arg2[%c0, %c0_0, %c0_1] : memref<1x4x256xf32, #tpu.memory_space<vmem>>, vector<1x4x256xf32>
    %1 = vector.shape_cast %0 : vector<1x4x256xf32> to vector<4x256xf32>
    %c0_2 = arith.constant 0 : index
    %c0_3 = arith.constant 0 : index
    %c0_4 = arith.constant 0 : index
    %2 = vector.load %arg3[%c0_2, %c0_3, %c0_4] : memref<1x4x256xf32, #tpu.memory_space<vmem>>, vector<1x4x256xf32>
    %3 = vector.shape_cast %2 : vector<1x4x256xf32> to vector<4x256xf32>
    %c0_5 = arith.constant 0 : index
    %c0_6 = arith.constant 0 : index
    %4 = vector.load %arg4[%c0_5, %c0_6] : memref<4x4xf32, #tpu.memory_space<vmem>>, vector<4x4xf32>
    %cst = arith.constant dense<0.000000e+00> : vector<4x256xf32>
    %5 = tpu.matmul %4, %1, %cst {dimension_numbers = #tpu.dot_dimension_numbers<[1], [0], [0], [1], [0, 0, 1, 1], [], []>} : vector<4x4xf32>, vector<4x256xf32>, vector<4x256xf32> -> vector<4x256xf32>
    %c0_7 = arith.constant 0 : index
    %c0_8 = arith.constant 0 : index
    %6 = vector.load %arg5[%c0_7, %c0_8] : memref<4x1xf32, #tpu.memory_space<vmem>>, vector<4x1xf32>
    %7 = vector.broadcast %6 : vector<4x1xf32> to vector<4x256xf32>
    %8 = arith.addf %5, %7 : vector<4x256xf32>
    %c0_9 = arith.constant 0 : index
    %c0_10 = arith.constant 0 : index
    %9 = vector.load %arg6[%c0_9, %c0_10] : memref<4x4xf32, #tpu.memory_space<vmem>>, vector<4x4xf32>
    %cst_11 = arith.constant dense<0.000000e+00> : vector<4x256xf32>
    %10 = tpu.matmul %9, %3, %cst_11 {dimension_numbers = #tpu.dot_dimension_numbers<[1], [0], [0], [1], [0, 0, 1, 1], [], []>} : vector<4x4xf32>, vector<4x256xf32>, vector<4x256xf32> -> vector<4x256xf32>
    %c0_12 = arith.constant 0 : index
    %c0_13 = arith.constant 0 : index
    %11 = vector.load %arg7[%c0_12, %c0_13] : memref<4x1xf32, #tpu.memory_space<vmem>>, vector<4x1xf32>
    %12 = vector.broadcast %11 : vector<4x1xf32> to vector<4x256xf32>
    %13 = arith.addf %10, %12 : vector<4x256xf32>
    %14 = arith.negf %8 : vector<4x256xf32>
    %15 = math.exp %14 : vector<4x256xf32>
    %cst_14 = arith.constant 1.000000e+00 : f32
    %16 = vector.broadcast %cst_14 : f32 to vector<4x256xf32>
    %17 = arith.addf %16, %15 : vector<4x256xf32>
    %18 = arith.divf %16, %17 : vector<4x256xf32>
    %19 = arith.negf %13 : vector<4x256xf32>
    %20 = math.exp %19 : vector<4x256xf32>
    %cst_15 = arith.constant 1.000000e+00 : f32
    %21 = vector.broadcast %cst_15 : f32 to vector<4x256xf32>
    %22 = arith.addf %21, %20 : vector<4x256xf32>
    %23 = arith.divf %21, %22 : vector<4x256xf32>
    %24 = arith.mulf %18, %1 : vector<4x256xf32>
    %25 = arith.mulf %23, %3 : vector<4x256xf32>
    %26 = arith.addf %24, %25 : vector<4x256xf32>
    %c0_16 = arith.constant 0 : index
    %c0_17 = arith.constant 0 : index
    %c0_18 = arith.constant 0 : index
    %27 = vector.load %arg8[%c0_16, %c0_17, %c0_18] : memref<1x4x256xf32, #tpu.memory_space<vmem>>, vector<1x4x256xf32>
    %28 = vector.shape_cast %27 : vector<1x4x256xf32> to vector<4x256xf32>
    %29 = vector.shape_cast %26 : vector<4x256xf32> to vector<1x4x256xf32>
    tpu.vector_store %arg8[%c0_16, %c0_17, %c0_18], %29 {strides = array<i32>} : memref<1x4x256xf32, #tpu.memory_space<vmem>>, vector<1x4x256xf32>,
    return
  }
  func.func @transform_0(%arg0: i32, %arg1: i32) -> (i32, i32, i32) {
    %c0_i32 = arith.constant 0 : i32
    %c0_i32_0 = arith.constant 0 : i32
    return %arg0, %c0_i32, %arg1 : i32, i32, i32
  }
  func.func @transform_1(%arg0: i32, %arg1: i32) -> (i32, i32, i32) {
    %c0_i32 = arith.constant 0 : i32
    %c0_i32_0 = arith.constant 0 : i32
    return %arg0, %c0_i32, %arg1 : i32, i32, i32
  }
  func.func @transform_2(%arg0: i32, %arg1: i32) -> (i32, i32) {
    %c0_i32 = arith.constant 0 : i32
    %c0_i32_0 = arith.constant 0 : i32
    %c0_i32_1 = arith.constant 0 : i32
    return %c0_i32, %c0_i32_0 : i32, i32
  }
  func.func @transform_3(%arg0: i32, %arg1: i32) -> (i32, i32) {
    %c0_i32 = arith.constant 0 : i32
    %c0_i32_0 = arith.constant 0 : i32
    %c0_i32_1 = arith.constant 0 : i32
    return %c0_i32, %c0_i32_0 : i32, i32
  }
  func.func @transform_4(%arg0: i32, %arg1: i32) -> (i32, i32) {
    %c0_i32 = arith.constant 0 : i32
    %c0_i32_0 = arith.constant 0 : i32
    %c0_i32_1 = arith.constant 0 : i32
    return %c0_i32, %c0_i32_0 : i32, i32
  }
  func.func @transform_5(%arg0: i32, %arg1: i32) -> (i32, i32) {
    %c0_i32 = arith.constant 0 : i32
    %c0_i32_0 = arith.constant 0 : i32
    %c0_i32_1 = arith.constant 0 : i32
    return %c0_i32, %c0_i32_0 : i32, i32
  }
  func.func @transform_6(%arg0: i32, %arg1: i32) -> (i32, i32, i32) {
    %c0_i32 = arith.constant 0 : i32
    %c0_i32_0 = arith.constant 0 : i32
    return %arg0, %c0_i32, %arg1 : i32, i32, i32
  }
}

</mosaic_0001>

<llo_original>
// kernel: tpu_custom_call.1
$region0: #{tpu_custom_call.1}
  #allocation0 [shape = 'u32[]', space=smem, size = 0x4, offset = 0x4, fixed_abs, tag = 'smem constant byte address 0x4 - core index']
  #allocation1 [shape = 'u32[72,128]{1,0:T(1,128)}', space=vmem, size = 0x9000, scoped, tag = 'internal scratch']
  %s0 = inlined_call_operand.hbm [shape: f32[2,4,256], index: 0, kind: input, shape index: {}]
  %s1 = inlined_call_operand.hbm [shape: f32[2,4,256], index: 1, kind: input, shape index: {}]
  %s2 = inlined_call_operand.vmem [shape: f32[4,4], index: 2, kind: input, shape index: {}]
  %s3 = inlined_call_operand.vmem [shape: f32[4,1], index: 3, kind: input, shape index: {}]
  %s4 = inlined_call_operand.vmem [shape: f32[4,4], index: 4, kind: input, shape index: {}]
  %s5 = inlined_call_operand.vmem [shape: f32[4,1], index: 5, kind: input, shape index: {}]
  %s6 = inlined_call_operand.hbm [shape: f32[2,4,256], index: 6, kind: output, shape index: {}]
  %s7 = sld [smem:[#allocation0]]
  $region65: #{tpu_custom_call.1} parent=0
    _
  %s9 = ssub.s32 1, %s7
  %s10 = scalar_select 0, %s9, %s7
  $region1: #{tpu_custom_call.1} parent=0
    #allocation2 [shape = 'u8[8192]{0}', space=vmem, size = 0x2000, scoped, tag = 'input window, operand 0']
    #allocation3 [shape = 's32[2]{0}', space=sflag, size = 0x8, scoped, tag = 'scoped memory for tpu_custom_call.1']
    #allocation4 [shape = 's32[2]{0}', space=sflag, size = 0x8, scoped, tag = 'scoped memory for tpu_custom_call.1']
    #allocation5 [shape = 'u8[8192]{0}', space=vmem, size = 0x2000, scoped, tag = 'input window, operand 1']
    #allocation6 [shape = 's32[2]{0}', space=sflag, size = 0x8, scoped, tag = 'scoped memory for tpu_custom_call.1']
    #allocation7 [shape = 'u8[8192]{0}', space=vmem, size = 0x2000, scoped, tag = 'output window, operand 0']
    %11 = vsyncpa [#allocation3], 0
    %s12 = scalar_lea.sflag [#allocation3], 1
    %13 = vsyncpa %s12, 0
    %14 = vsyncpa [#allocation6], 0
    %s15 = scalar_lea.sflag [#allocation6], 1
    %16 = vsyncpa %s15, 0
    %17 = vsyncpa [#allocation4], 0
    %s18 = scalar_lea.sflag [#allocation4], 1
    %19 = vsyncpa %s18, 0
    loop: start=0, step=1, limit=4
    $region2: #{tpu_custom_call.1} parent=1 // loop_pre_header
      _
    $region3: #{tpu_custom_call.1} parent=1 // loop_header
      %s21 = sphi 0, %s25
      %p22 = scmp.ge.s32.totalorder %s21, 4
      %s28 = sphi 0, %s40
      %s29 = sphi 0, %s36
      %s30 = sphi 0, %s28
      %s31 = sphi 0, %s29
      %s32 = sphi 0, %s30
      %s33 = sphi 0, %s31
      %s45 = sphi 0, %s47
      %s48 = sphi 0, %s45
      %s49 = sphi 0, %s48
      %s65 = sphi 0, %s49
      %s73 = sphi 0, %s75
      %s76 = sphi 0, %s73
      %s77 = sphi 0, %s76
      %s93 = sphi 0, %s77
      %s97 = sphi 0, %s97
      %s99 = sphi 0, %s97
      %s100 = sphi 0, %s99
      %s114 = sphi 0, %s100
      %s118 = sphi 0, %s118
      %s120 = sphi 0, %s118
      %s121 = sphi 0, %s120
      %s135 = sphi 0, %s121
      %s139 = sphi 0, %s139
      %s141 = sphi 0, %s139
      %s142 = sphi 0, %s141
      %s156 = sphi 0, %s142
      %s160 = sphi 0, %s160
      %s162 = sphi 0, %s160
      %s163 = sphi 0, %s162
      %s177 = sphi 0, %s163
      %s185 = sphi 0, %s187
      %s188 = sphi 0, %s185
      %s189 = sphi 0, %s188
      %s205 = sphi 0, %s189
    $region4: #{tpu_custom_call.1} parent=1 // loop_header_branch
      %24 = sbr.rel (%p22) target = $region8
    $region5: #{tpu_custom_call.1} parent=1 // loop_body
      %s26 = ssub.s32 %s21, 1
      %s27 = ssub.s32 %s21, 2
      %s34 = sadd.s32 1, %s29
      %p35 = scmp.ge.s32.totalorder %s34, 1
      %s36 = scalar_select %p35, 0, %s34
      %s37 = sadd.s32 1, %s28
      %s38 = scalar_select %p35, %s37, %s28
      %p39 = scmp.ge.s32.totalorder %s38, 2
      %s40 = scalar_select %p39, 0, %s38
      %s41 = ssub.s32 %s28, %s40
      %s42 = ssub.s32 %s29, %s36
      %s43 = sor.u32 %s41, %s42
      %p44 = scmp.eq.s32.totalorder %s43, 0
      %s46 = sadd.s32 %s45, 1
      %s47 = scalar_select %p44, %s45, %s46
      %p50 = pneg %p44
      %p51 = scmp.eq.s32.totalorder %s21, 1
      %p52 = por %p50, %p51
      %p53 = scmp.ne.s32.totalorder %s45, %s48
      %p54 = scmp.eq.s32.totalorder %s21, 0
      %p55 = por %p53, %p54
      %p56 = scmp.ne.s32.totalorder %s45, %s48
      %p57 = scmp.eq.s32.totalorder %s26, 1
      %p58 = por %p56, %p57
      %p59 = scmp.ne.s32.totalorder %s48, %s49
      %p60 = scmp.eq.s32.totalorder %s26, 0
      %p61 = por %p59, %p60
      %p62 = scmp.ne.s32.totalorder %s48, %s49
      %p63 = scmp.eq.s32.totalorder %s27, 1
      %p64 = por %p62, %p63
      %p66 = scmp.ne.s32.totalorder %s49, %s65
      %p67 = scmp.eq.s32.totalorder %s27, 0
      %p68 = por %p66, %p67
      %s69 = ssub.s32 %s28, %s40
      %s70 = ssub.s32 %s29, %s36
      %s71 = sor.u32 %s69, %s70
      %p72 = scmp.eq.s32.totalorder %s71, 0
      %s74 = sadd.s32 %s73, 1
      %s75 = scalar_select %p72, %s73, %s74
      %p78 = pneg %p72
      %p79 = scmp.eq.s32.totalorder %s21, 1
      %p80 = por %p78, %p79
      %p81 = scmp.ne.s32.totalorder %s73, %s76
      %p82 = scmp.eq.s32.totalorder %s21, 0
      %p83 = por %p81, %p82
      %p84 = scmp.ne.s32.totalorder %s73, %s76
      %p85 = scmp.eq.s32.totalorder %s26, 1
      %p86 = por %p84, %p85
      %p87 = scmp.ne.s32.totalorder %s76, %s77
      %p88 = scmp.eq.s32.totalorder %s26, 0
      %p89 = por %p87, %p88
      %p90 = scmp.ne.s32.totalorder %s76, %s77
      %p91 = scmp.eq.s32.totalorder %s27, 1
      %p92 = por %p90, %p91
      %p94 = scmp.ne.s32.totalorder %s77, %s93
      %p95 = scmp.eq.s32.totalorder %s27, 0
      %p96 = por %p94, %p95
      %s98 = sadd.s32 %s97, 1
      %p101 = scmp.eq.s32.totalorder %s21, 1
      %p102 = scmp.ne.s32.totalorder %s97, %s99
      %p103 = scmp.eq.s32.totalorder %s21, 0
      %p104 = por %p102, %p103
      %p105 = scmp.ne.s32.totalorder %s97, %s99
      %p106 = scmp.eq.s32.totalorder %s26, 1
      %p107 = por %p105, %p106
      %p108 = scmp.ne.s32.totalorder %s99, %s100
      %p109 = scmp.eq.s32.totalorder %s26, 0
      %p110 = por %p108, %p109
      %p111 = scmp.ne.s32.totalorder %s99, %s100
      %p112 = scmp.eq.s32.totalorder %s27, 1
      %p113 = por %p111, %p112
      %p115 = scmp.ne.s32.totalorder %s100, %s114
      %p116 = scmp.eq.s32.totalorder %s27, 0
      %p117 = por %p115, %p116
      %s119 = sadd.s32 %s118, 1
      %p122 = scmp.eq.s32.totalorder %s21, 1
      %p123 = scmp.ne.s32.totalorder %s118, %s120
      %p124 = scmp.eq.s32.totalorder %s21, 0
      %p125 = por %p123, %p124
      %p126 = scmp.ne.s32.totalorder %s118, %s120
      %p127 = scmp.eq.s32.totalorder %s26, 1
      %p128 = por %p126, %p127
      %p129 = scmp.ne.s32.totalorder %s120, %s121
      %p130 = scmp.eq.s32.totalorder %s26, 0
      %p131 = por %p129, %p130
      %p132 = scmp.ne.s32.totalorder %s120, %s121
      %p133 = scmp.eq.s32.totalorder %s27, 1
      %p134 = por %p132, %p133
      %p136 = scmp.ne.s32.totalorder %s121, %s135
      %p137 = scmp.eq.s32.totalorder %s27, 0
      %p138 = por %p136, %p137
      %s140 = sadd.s32 %s139, 1
      %p143 = scmp.eq.s32.totalorder %s21, 1
      %p144 = scmp.ne.s32.totalorder %s139, %s141
      %p145 = scmp.eq.s32.totalorder %s21, 0
      %p146 = por %p144, %p145
      %p147 = scmp.ne.s32.totalorder %s139, %s141
      %p148 = scmp.eq.s32.totalorder %s26, 1
      %p149 = por %p147, %p148
      %p150 = scmp.ne.s32.totalorder %s141, %s142
      %p151 = scmp.eq.s32.totalorder %s26, 0
      %p152 = por %p150, %p151
      %p153 = scmp.ne.s32.totalorder %s141, %s142
      %p154 = scmp.eq.s32.totalorder %s27, 1
      %p155 = por %p153, %p154
      %p157 = scmp.ne.s32.totalorder %s142, %s156
      %p158 = scmp.eq.s32.totalorder %s27, 0
      %p159 = por %p157, %p158
      %s161 = sadd.s32 %s160, 1
      %p164 = scmp.eq.s32.totalorder %s21, 1
      %p165 = scmp.ne.s32.totalorder %s160, %s162
      %p166 = scmp.eq.s32.totalorder %s21, 0
      %p167 = por %p165, %p166
      %p168 = scmp.ne.s32.totalorder %s160, %s162
      %p169 = scmp.eq.s32.totalorder %s26, 1
      %p170 = por %p168, %p169
      %p171 = scmp.ne.s32.totalorder %s162, %s163
      %p172 = scmp.eq.s32.totalorder %s26, 0
      %p173 = por %p171, %p172
      %p174 = scmp.ne.s32.totalorder %s162, %s163
      %p175 = scmp.eq.s32.totalorder %s27, 1
      %p176 = por %p174, %p175
      %p178 = scmp.ne.s32.totalorder %s163, %s177
      %p179 = scmp.eq.s32.totalorder %s27, 0
      %p180 = por %p178, %p179
      %s181 = ssub.s32 %s28, %s40
      %s182 = ssub.s32 %s29, %s36
      %s183 = sor.u32 %s181, %s182
      %p184 = scmp.eq.s32.totalorder %s183, 0
      %s186 = sadd.s32 %s185, 1
      %s187 = scalar_select %p184, %s185, %s186
      %p190 = pneg %p184
      %p191 = scmp.eq.s32.totalorder %s21, 1
      %p192 = por %p190, %p191
      %p193 = scmp.ne.s32.totalorder %s185, %s188
      %p194 = scmp.eq.s32.totalorder %s21, 0
      %p195 = por %p193, %p194
      %p196 = scmp.ne.s32.totalorder %s185, %s188
      %p197 = scmp.eq.s32.totalorder %s26, 1
      %p198 = por %p196, %p197
      %p199 = scmp.ne.s32.totalorder %s188, %s189
      %p200 = scmp.eq.s32.totalorder %s26, 0
      %p201 = por %p199, %p200
      %p202 = scmp.ne.s32.totalorder %s188, %s189
      %p203 = scmp.eq.s32.totalorder %s27, 1
      %p204 = por %p202, %p203
      %p206 = scmp.ne.s32.totalorder %s189, %s205
      %p207 = scmp.eq.s32.totalorder %s27, 0
      %p208 = por %p206, %p207
      %p209 = scmp.le.s32.totalorder 1, %s21
      %p210 = scmp.lt.s32.totalorder %s21, 3
      %p211 = pnand %p209, %p210
      %p212 = pneg %p211
      // Predicated region
      $region9: #{tpu_custom_call.1} parent=5 // pred_check
        _
      $region10: #{tpu_custom_call.1} parent=5 // pred_check_branch
        %214 = sbr.rel (%p211) target = $region12
      $region11: #{tpu_custom_call.1} parent=5 // pred_region
        %s215 = ssub.s32 %s21, 1
        // Predicated region
        $region13: #{tpu_custom_call.1} parent=11 // pred_check
          %p216 = pneg %p110
        $region14: #{tpu_custom_call.1} parent=11 // pred_check_branch
          %218 = sbr.rel (%p216) target = $region16
        $region15: #{tpu_custom_call.1} parent=11 // pred_region
          _
        $region16: #{tpu_custom_call.1} parent=11 // pred_fallthru
          _
        // Predicated region
        $region17: #{tpu_custom_call.1} parent=11 // pred_check
          %p219 = pneg %p131
        $region18: #{tpu_custom_call.1} parent=11 // pred_check_branch
          %221 = sbr.rel (%p219) target = $region20
        $region19: #{tpu_custom_call.1} parent=11 // pred_region
          _
        $region20: #{tpu_custom_call.1} parent=11 // pred_fallthru
          _
        // Predicated region
        $region21: #{tpu_custom_call.1} parent=11 // pred_check
          %p222 = pneg %p152
        $region22: #{tpu_custom_call.1} parent=11 // pred_check_branch
          %224 = sbr.rel (%p222) target = $region24
        $region23: #{tpu_custom_call.1} parent=11 // pred_region
          _
        $region24: #{tpu_custom_call.1} parent=11 // pred_fallthru
          _
        // Predicated region
        $region25: #{tpu_custom_call.1} parent=11 // pred_check
          %p225 = pneg %p173
        $region26: #{tpu_custom_call.1} parent=11 // pred_check_branch
          %227 = sbr.rel (%p225) target = $region28
        $region27: #{tpu_custom_call.1} parent=11 // pred_region
          _
        $region28: #{tpu_custom_call.1} parent=11 // pred_fallthru
          _
      $region12: #{tpu_custom_call.1} parent=5 // pred_fallthru
        _
      %p228 = scmp.lt.s32.totalorder %s21, 2
      // Predicated region
      $region29: #{tpu_custom_call.1} parent=5 // pred_check
        %p229 = pneg %p228
      $region30: #{tpu_custom_call.1} parent=5 // pred_check_branch
        %231 = sbr.rel (%p229) target = $region32
      $region31: #{tpu_custom_call.1} parent=5 // pred_region
        // Predicated region
        $region33: #{tpu_custom_call.1} parent=31 // pred_check
          %p232 = pneg %p55
        $region34: #{tpu_custom_call.1} parent=31 // pred_check_branch
          %234 = sbr.rel (%p232) target = $region36
        $region35: #{tpu_custom_call.1} parent=31 // pred_region
          %s235 = sand.u32 %s45, 1
          %s236 = scalar_lea.sflag [#allocation3], %s235
          %s237 = sand.u32 %s45, 1
          %s238 = smul.addr %s237, 8
          %s239 = scalar_lea.vmem [#allocation2], %s238
          %s240 = smul.u32 2, %s29
          %242 = vsyncadd %s236, 0
          %s243 = smul.addr %s28, 2
          %s244 = sadd.s32 %s240, %s243
          %s245 = smul.addr %s244, 4
          %s246 = scalar_lea.hbm %s0, %s245
          %s248 = sshll.u32 %s246, 4
          %s249 = int_to_ptr.hbm [resolvable:$true] %s248
          %s250 = sshll.u32 %s239, 4
          %s251 = int_to_ptr.vmem [resolvable:$true] %s250
          %253 = dma.hbm_to_vmem [thread:$0]  %s249, 128, %s251, %s236
        $region36: #{tpu_custom_call.1} parent=31 // pred_fallthru
          _
        // Predicated region
        $region37: #{tpu_custom_call.1} parent=31 // pred_check
          %p254 = pneg %p83
        $region38: #{tpu_custom_call.1} parent=31 // pred_check_branch
          %256 = sbr.rel (%p254) target = $region40
        $region39: #{tpu_custom_call.1} parent=31 // pred_region
          %s257 = sand.u32 %s73, 1
          %s258 = scalar_lea.sflag [#allocation6], %s257
          %s259 = sand.u32 %s73, 1
          %s260 = smul.addr %s259, 8
          %s261 = scalar_lea.vmem [#allocation5], %s260
          %s262 = smul.u32 2, %s29
          %264 = vsyncadd %s258, 0
          %s265 = smul.addr %s28, 2
          %s266 = sadd.s32 %s262, %s265
          %s267 = smul.addr %s266, 4
          %s268 = scalar_lea.hbm %s1, %s267
          %s270 = sshll.u32 %s268, 4
          %s271 = int_to_ptr.hbm [resolvable:$true] %s270
          %s272 = sshll.u32 %s261, 4
          %s273 = int_to_ptr.vmem [resolvable:$true] %s272
          %275 = dma.hbm_to_vmem [thread:$0]  %s271, 128, %s273, %s258
        $region40: #{tpu_custom_call.1} parent=31 // pred_fallthru
          _
      $region32: #{tpu_custom_call.1} parent=5 // pred_fallthru
        _
      %p276 = scmp.le.s32.totalorder 1, %s21
      %p277 = scmp.lt.s32.totalorder %s21, 3
      %p278 = pnand %p276, %p277
      %p279 = pneg %p278
      // Predicated region
      $region41: #{tpu_custom_call.1} parent=5 // pred_check
        _
      $region42: #{tpu_custom_call.1} parent=5 // pred_check_branch
        %281 = sbr.rel (%p278) target = $region44
      $region43: #{tpu_custom_call.1} parent=5 // pred_region
        %s282 = ssub.s32 %s21, 1
        %s283 = sand.u32 %s48, 1
        %s284 = scalar_lea.sflag [#allocation3], %s283
        %s285 = sand.u32 %s48, 1
        %s286 = smul.addr %s285, 8
        %s287 = scalar_lea.vmem [#allocation2], %s286
        // Predicated region
        $region45: #{tpu_custom_call.1} parent=43 // pred_check
          %p288 = pneg %p61
        $region46: #{tpu_custom_call.1} parent=43 // pred_check_branch
          %290 = sbr.rel (%p288) target = $region48
        $region47: #{tpu_custom_call.1} parent=43 // pred_region
          %292 = dma.done %s284, 128
        $region48: #{tpu_custom_call.1} parent=43 // pred_fallthru
          _
        %s293 = sand.u32 %s76, 1
        %s294 = scalar_lea.sflag [#allocation6], %s293
        %s295 = sand.u32 %s76, 1
        %s296 = smul.addr %s295, 8
        %s297 = scalar_lea.vmem [#allocation5], %s296
        // Predicated region
        $region49: #{tpu_custom_call.1} parent=43 // pred_check
          %p298 = pneg %p89
        $region50: #{tpu_custom_call.1} parent=43 // pred_check_branch
          %300 = sbr.rel (%p298) target = $region52
        $region51: #{tpu_custom_call.1} parent=43 // pred_region
          %302 = dma.done %s294, 128
        $region52: #{tpu_custom_call.1} parent=43 // pred_fallthru
          _
        %s303 = sand.u32 %s48, 1
        %s304 = scalar_lea.sflag [#allocation3], %s303
        %s305 = sand.u32 %s48, 1
        %s306 = smul.addr %s305, 8
        %s307 = scalar_lea.vmem [#allocation2], %s306
        %p308 = pneg %p61
        %p309 = pneg %p58
        %s310 = sand.u32 %s76, 1
        %s311 = scalar_lea.sflag [#allocation6], %s310
        %s312 = sand.u32 %s76, 1
        %s313 = smul.addr %s312, 8
        %s314 = scalar_lea.vmem [#allocation5], %s313
        %p315 = pneg %p89
        %p316 = pneg %p86
        %p317 = pneg %p110
        %p318 = pneg %p107
        %p319 = pneg %p131
        %p320 = pneg %p128
        %p321 = pneg %p152
        %p322 = pneg %p149
        %p323 = pneg %p173
        %p324 = pneg %p170
        %p325 = pneg %p201
        %p326 = pneg %p198
        %s327 = sand.u32 %s188, 1
        %s328 = scalar_lea.sflag [#allocation4], %s327
        %s329 = sand.u32 %s188, 1
        %s330 = smul.addr %s329, 8
        %s331 = scalar_lea.vmem [#allocation7], %s330
        %s332 = smul.u32 2, %s31
        %s333 = smul.u32 2, %s31
        %s334 = smul.u32 2, %s31
        %v335 = vld [vmem:[%s287] sm:$0xff]
        %v336 = vld [vmem:[%s297] sm:$0xff]
        %v337 = vld [vmem:[%s2] sm:$0xf]
        %v338 = vld [vmem:[%s3] sm:$0xf]
        %340 = vset.pattern.permute.xlu0 0
        %341 = vperm.xlu0 %340, %v338
        %v342 = vpop.permute.xlu0 %341
        %345 = vst [vmem:[#allocation1] ss:$2 sm:$0xff] %v335
        %v346 = vld.sshfl [vmem:[#allocation1] sm:$0xff pattern:$0x75316420]
        %v347 = vld.sshfl [vmem:[#allocation1 + $0x8] sm:$0xff pattern:$0x75316420]
        %vm348 = vcmask 31744
        %v350 = vsel %vm348, %v337, 0
        %vm352 = vcmask 1043456
        %v353 = vsel %vm352, %v346, 0
        %v355 = vsel %vm352, %v347, 0
        %357 = vmatpush.msra.mxu0 0.0
        %358 = vmatpush.msra.mxu0 0.0
        %359 = vmatpush.msra.mxu0 0.0
        %360 = vmatpush.msra.mxu0 0.0
        %361 = vmatpush.msra.mxu0 0.0
        %362 = vmatpush.msra.mxu0 0.0
        %363 = vmatpush.msra.mxu0 0.0
        %364 = vmatpush.msra.mxu0 0.0
        %365 = vmatpush.msra.mxu0 0.0
        %366 = vmatpush.msra.mxu0 0.0
        %367 = vmatpush.msra.mxu0 0.0
        %368 = vmatpush.msra.mxu0 0.0
        %369 = vmatpush.msra.mxu0 0.0
        %370 = vmatpush.msra.mxu0 0.0
        %371 = vmatpush.msra.mxu0 0.0
        %372 = vmatpush.msra.mxu0 %v353
        %373 = vmatmul.f32.gmra.mxu0 %v350
        %v374 = vpop.f32.mrf.mxu0
        %v375 = vadd.f32 %v342, %v374
        %376 = vdwg.mxu0
        %377 = vmatpush.msra.mxu0 0.0
        %378 = vmatpush.msra.mxu0 0.0
        %379 = vmatpush.msra.mxu0 0.0
        %380 = vmatpush.msra.mxu0 0.0
        %381 = vmatpush.msra.mxu0 0.0
        %382 = vmatpush.msra.mxu0 0.0
        %383 = vmatpush.msra.mxu0 0.0
        %384 = vmatpush.msra.mxu0 0.0
        %385 = vmatpush.msra.mxu0 0.0
        %386 = vmatpush.msra.mxu0 0.0
        %387 = vmatpush.msra.mxu0 0.0
        %388 = vmatpush.msra.mxu0 0.0
        %389 = vmatpush.msra.mxu0 0.0
        %390 = vmatpush.msra.mxu0 0.0
        %391 = vmatpush.msra.mxu0 0.0
        %392 = vmatpush.msra.mxu0 %v355
        %393 = vmatmul.f32.gmra.mxu0 %v350
        %v394 = vpop.f32.mrf.mxu0
        %v395 = vadd.f32 %v342, %v394
        %396 = vdwg.mxu0
        %v397 = vld [vmem:[%s4] sm:$0xf]
        %v398 = vld [vmem:[%s5] sm:$0xf]
        %400 = vset.pattern.permute.xlu0 0
        %401 = vperm.xlu0 %400, %v398
        %v402 = vpop.permute.xlu0 %401
        %405 = vst [vmem:[#allocation1] ss:$2 sm:$0xff] %v336
        %v406 = vld.sshfl [vmem:[#allocation1] sm:$0xff pattern:$0x75316420]
        %v407 = vld.sshfl [vmem:[#allocation1 + $0x8] sm:$0xff pattern:$0x75316420]
        %v409 = vsel %vm348, %v397, 0
        %v411 = vsel %vm352, %v406, 0
        %v413 = vsel %vm352, %v407, 0
        %415 = vmatpush.msra.mxu0 0.0
        %416 = vmatpush.msra.mxu0 0.0
        %417 = vmatpush.msra.mxu0 0.0
        %418 = vmatpush.msra.mxu0 0.0
        %419 = vmatpush.msra.mxu0 0.0
        %420 = vmatpush.msra.mxu0 0.0
        %421 = vmatpush.msra.mxu0 0.0
        %422 = vmatpush.msra.mxu0 0.0
        %423 = vmatpush.msra.mxu0 0.0
        %424 = vmatpush.msra.mxu0 0.0
        %425 = vmatpush.msra.mxu0 0.0
        %426 = vmatpush.msra.mxu0 0.0
        %427 = vmatpush.msra.mxu0 0.0
        %428 = vmatpush.msra.mxu0 0.0
        %429 = vmatpush.msra.mxu0 0.0
        %430 = vmatpush.msra.mxu0 %v411
        %431 = vmatmul.f32.gmra.mxu0 %v409
        %v432 = vpop.f32.mrf.mxu0
        %v433 = vadd.f32 %v402, %v432
        %434 = vdwg.mxu0
        %435 = vmatpush.msra.mxu0 0.0
        %436 = vmatpush.msra.mxu0 0.0
        %437 = vmatpush.msra.mxu0 0.0
        %438 = vmatpush.msra.mxu0 0.0
        %439 = vmatpush.msra.mxu0 0.0
        %440 = vmatpush.msra.mxu0 0.0
        %441 = vmatpush.msra.mxu0 0.0
        %442 = vmatpush.msra.mxu0 0.0
        %443 = vmatpush.msra.mxu0 0.0
        %444 = vmatpush.msra.mxu0 0.0
        %445 = vmatpush.msra.mxu0 0.0
        %446 = vmatpush.msra.mxu0 0.0
        %447 = vmatpush.msra.mxu0 0.0
        %448 = vmatpush.msra.mxu0 0.0
        %449 = vmatpush.msra.mxu0 0.0
        %450 = vmatpush.msra.mxu0 %v413
        %451 = vmatmul.f32.gmra.mxu0 %v409
        %v452 = vpop.f32.mrf.mxu0
        %v453 = vadd.f32 %v402, %v452
        %454 = vdwg.mxu0
        %v455 = vxor.u32 %v375, 2147483648
        %v456 = vxor.u32 %v395, 2147483648
        %v457 = vmul.f32 %v455, 1.442695
        %v458 = vpow.pop %v457
        %v459 = vmul.f32 %v456, 1.442695
        %v460 = vpow.pop %v459
        %v461 = vadd.f32 %v458, 1.0
        %v462 = vadd.f32 %v460, 1.0
        %v463 = vrcp.pop %v461
        %v464 = vmul.f32 %v461, %v463
        %v465 = vsub.f32 1.0, %v464
        %v466 = vmul.f32 %v463, %v465
        %v467 = vadd.f32 %v463, %v466
        %vm468 = vweird.f32 %v461
        %vm469 = vweird.f32 %v463
        %vm470 = vmor %vm468, %vm469
        %v471 = vsel %vm470, %v463, %v467
        %v472 = vand.u32 2147483647, %v461
        %vm473 = vcmp.eq.f32.partialorder %v472, 8.507059e+37
        %v474 = vand.u32 %v461, 2147483648
        %v475 = vor.u32 1.1754944e-38, %v474
        %v476 = vsel %vm473, %v475, %v471
        %v477 = vmul.f32 1.0, %v476
        %v478 = vrcp.pop %v462
        %v479 = vmul.f32 %v462, %v478
        %v480 = vsub.f32 1.0, %v479
        %v481 = vmul.f32 %v478, %v480
        %v482 = vadd.f32 %v478, %v481
        %vm483 = vweird.f32 %v462
        %vm484 = vweird.f32 %v478
        %vm485 = vmor %vm483, %vm484
        %v486 = vsel %vm485, %v478, %v482
        %v487 = vand.u32 2147483647, %v462
        %vm488 = vcmp.eq.f32.partialorder %v487, 8.507059e+37
        %v489 = vand.u32 %v462, 2147483648
        %v490 = vor.u32 1.1754944e-38, %v489
        %v491 = vsel %vm488, %v490, %v486
        %v492 = vmul.f32 1.0, %v491
        %v493 = vxor.u32 %v433, 2147483648
        %v494 = vxor.u32 %v453, 2147483648
        %v495 = vmul.f32 %v493, 1.442695
        %v496 = vpow.pop %v495
        %v497 = vmul.f32 %v494, 1.442695
        %v498 = vpow.pop %v497
        %v499 = vadd.f32 %v496, 1.0
        %v500 = vadd.f32 %v498, 1.0
        %v501 = vrcp.pop %v499
        %v502 = vmul.f32 %v499, %v501
        %v503 = vsub.f32 1.0, %v502
        %v504 = vmul.f32 %v501, %v503
        %v505 = vadd.f32 %v501, %v504
        %vm506 = vweird.f32 %v499
        %vm507 = vweird.f32 %v501
        %vm508 = vmor %vm506, %vm507
        %v509 = vsel %vm508, %v501, %v505
        %v510 = vand.u32 2147483647, %v499
        %vm511 = vcmp.eq.f32.partialorder %v510, 8.507059e+37
        %v512 = vand.u32 %v499, 2147483648
        %v513 = vor.u32 1.1754944e-38, %v512
        %v514 = vsel %vm511, %v513, %v509
        %v515 = vmul.f32 1.0, %v514
        %v516 = vrcp.pop %v500
        %v517 = vmul.f32 %v500, %v516
        %v518 = vsub.f32 1.0, %v517
        %v519 = vmul.f32 %v516, %v518
        %v520 = vadd.f32 %v516, %v519
        %vm521 = vweird.f32 %v500
        %vm522 = vweird.f32 %v516
        %vm523 = vmor %vm521, %vm522
        %v524 = vsel %vm523, %v516, %v520
        %v525 = vand.u32 2147483647, %v500
        %vm526 = vcmp.eq.f32.partialorder %v525, 8.507059e+37
        %v527 = vand.u32 %v500, 2147483648
        %v528 = vor.u32 1.1754944e-38, %v527
        %v529 = vsel %vm526, %v528, %v524
        %v530 = vmul.f32 1.0, %v529
        %531 = vst [vmem:[#allocation1] ss:$2 sm:$0xff] %v335
        %v532 = vld.sshfl [vmem:[#allocation1] sm:$0xff pattern:$0x75316420]
        %v533 = vld.sshfl [vmem:[#allocation1 + $0x8] sm:$0xff pattern:$0x75316420]
        %v536 = vmul.f32 %v477, %v532
        %v537 = vmul.f32 %v492, %v533
        %538 = vst [vmem:[#allocation1] ss:$2 sm:$0xff] %v336
        %v539 = vld.sshfl [vmem:[#allocation1] sm:$0xff pattern:$0x75316420]
        %v540 = vld.sshfl [vmem:[#allocation1 + $0x8] sm:$0xff pattern:$0x75316420]
        %v543 = vmul.f32 %v515, %v539
        %v544 = vmul.f32 %v530, %v540
        %v545 = vadd.f32 %v536, %v543
        %v546 = vadd.f32 %v537, %v544
        %v549 = vrot.slane %v546, 4
        %v550 = vsel %vm352, %v545, %v549
        %552 = vst [vmem:[%s331] sm:$0xff] %v550
        %s553 = sand.u32 %s188, 1
        %s554 = scalar_lea.sflag [#allocation4], %s553
        %s555 = sand.u32 %s188, 1
        %s556 = smul.addr %s555, 8
        %s557 = scalar_lea.vmem [#allocation7], %s556
        // Predicated region
        $region53: #{tpu_custom_call.1} parent=43 // pred_check
          %p558 = pneg %p198
        $region54: #{tpu_custom_call.1} parent=43 // pred_check_branch
          %560 = sbr.rel (%p558) target = $region56
        $region55: #{tpu_custom_call.1} parent=43 // pred_region
          %s561 = smul.u32 2, %s31
          %563 = vsyncadd %s554, 0
          %s564 = smul.addr %s30, 2
          %s565 = sadd.s32 %s561, %s564
          %s566 = smul.addr %s565, 4
          %s567 = scalar_lea.hbm %s6, %s566
          %s569 = sshll.u32 %s557, 4
          %s570 = int_to_ptr.vmem [resolvable:$true] %s569
          %s571 = sshll.u32 %s567, 4
          %s572 = int_to_ptr.hbm [resolvable:$true] %s571
          %574 = dma.vmem_to_hbm [thread:$0]  %s570, 128, %s572, %s554
        $region56: #{tpu_custom_call.1} parent=43 // pred_fallthru
          _
      $region44: #{tpu_custom_call.1} parent=5 // pred_fallthru
        _
      %p575 = scmp.le.s32.totalorder 2, %s21
      // Predicated region
      $region57: #{tpu_custom_call.1} parent=5 // pred_check
        %p576 = pneg %p575
      $region58: #{tpu_custom_call.1} parent=5 // pred_check_branch
        %578 = sbr.rel (%p576) target = $region60
      $region59: #{tpu_custom_call.1} parent=5 // pred_region
        %s579 = ssub.s32 %s21, 2
        // Predicated region
        $region61: #{tpu_custom_call.1} parent=59 // pred_check
          %p580 = pneg %p204
        $region62: #{tpu_custom_call.1} parent=59 // pred_check_branch
          %582 = sbr.rel (%p580) target = $region64
        $region63: #{tpu_custom_call.1} parent=59 // pred_region
          %s583 = sand.u32 %s189, 1
          %s584 = scalar_lea.sflag [#allocation4], %s583
          %s585 = sand.u32 %s189, 1
          %s586 = smul.addr %s585, 8
          %s587 = scalar_lea.vmem [#allocation7], %s586
          %589 = dma.done %s584, 128
        $region64: #{tpu_custom_call.1} parent=59 // pred_fallthru
          _
      $region60: #{tpu_custom_call.1} parent=5 // pred_fallthru
        _
    $region6: #{tpu_custom_call.1} parent=1 // loop_footer
      %s25 = sadd.s32 1, %s21
    $region7: #{tpu_custom_call.1} parent=1 // loop_footer_branch
      %20 = sbr.rel target = $region3
    $region8: #{tpu_custom_call.1} parent=1 // loop_exit
      _
    %590 = vsyncpa [#allocation3], 1
    %s591 = scalar_lea.sflag [#allocation3], 1
    %592 = vsyncpa %s591, 1
    %593 = vsyncpa [#allocation6], 1
    %s594 = scalar_lea.sflag [#allocation6], 1
    %595 = vsyncpa %s594, 1
    %596 = vsyncpa [#allocation4], 1
    %s597 = scalar_lea.sflag [#allocation4], 1
    %598 = vsyncpa %s597, 1

</llo_original>
